<compile_context>
chip_gen: v6e
topology: v6e:2x2x1
jax: 0.10.0
libtpu: 0.0.40
codegen_flags: <defaults>
</compile_context>

<pallas_src>
import functools

import jax
import jax.numpy as jnp
from jax.experimental import pallas as pl
from jax.experimental.pallas import tpu as pltpu


def _round_up(x, m):
    return (x + m - 1) // m * m


def _cdiv(a, b):
    return -(-a // b)


def _vmem_capacity_bytes():
    try:
        return int(pltpu.get_tpu_info().vmem_capacity_bytes)
    except Exception:
        return 64 << 20  # conservative default: v7x per-TensorCore VMEM


def _pick_time_tile(tp, batch, hp_pad, hqp, vmem_cap):
    """Pooled-time tile: big enough for MXU/pipeline, small enough for VMEM."""
    if vmem_cap >= (96 << 20):        # 128 MiB VMEM parts (v5e / v6e)
        tt_cap, budget = 1024, 100 << 20
    else:                             # 64 MiB per-TC parts (v7x)
        tt_cap, budget = 512, 52 << 20
    # worst-case double-buffered bf16 weights + headroom (prev_z, misc)
    fixed = 8 * hp_pad * hqp + (8 << 20)
    # per pooled row: double-buffered bf16 in/out tiles + f32/bf16 intermediates
    per_row = 16 * hp_pad + 8 * hqp
    budget_rows = max(8, (budget - fixed) // per_row)
    tt_cap = max(8, min(tt_cap, (budget_rows // 8) * 8))
    # pick tiles-per-batch: respect the cap, keep >=4 total grid steps when
    # possible (pipeline depth / both v7x TCs), never drop below 8-row tiles.
    tpb = max(_cdiv(tp, tt_cap), _cdiv(4, batch))
    tpb = min(tpb, _cdiv(tp, 8))
    return _round_up(_cdiv(tp, tpb), 8)


def _causal_pooled_residual_kernel(prev_ref, x_ref, wdT_ref, bd_ref, wuT_ref,
                                   bu_ref, o_ref, *, prev_resident):
    # prev_ref: (n_tiles, Hqp) f32 resident  OR  (1, 1, Hqp) f32 per-tile
    # x_ref:    (1, TT, Hp_pad)  bf16 pooled input rows of this tile
    # wdT_ref:  (Hp_pad, Hqp)    bf16 DownPool weight^T (zero padded)
    # bd_ref:   (1, Hqp)         f32
    # wuT_ref:  (Hqp, Hp_pad)    bf16 UpPool weight^T (zero padded)
    # bu_ref:   (1, Hp_pad)      f32
    # o_ref:    (1, TT, Hp_pad)  bf16
    x_bf16 = x_ref[0]                                              # (TT, Hp_pad)

    # DownPool linear on UNshifted rows (bf16 operands, f32 accumulation).
    z = jnp.dot(x_bf16, wdT_ref[...],
                preferred_element_type=jnp.float32) + bd_ref[...]  # (TT, Hqp) f32

    # sequential block == identity (see TODO above)

    # Causal shift AFTER the linear: row i takes z[i-1]; row 0 takes the
    # precomputed prev_z (exactly zero at batch starts, matching the pad).
    if prev_resident:
        j = pl.program_id(0)
        prev_z = prev_ref[pl.ds(j, 1), :]                          # (1, Hqp)
    else:
        prev_z = prev_ref[0]                                       # (1, Hqp)
    rolled = pltpu.roll(z, shift=1, axis=0)                        # XLU sublane roll
    row0 = jax.lax.broadcasted_iota(jnp.int32, z.shape, 0) == 0
    z_shift = jnp.where(row0, prev_z, rolled)                      # (TT, Hqp)

    # UpPool linear; bias + residual fused into one f32 add, stored as bf16.
    y = jnp.dot(z_shift.astype(jnp.bfloat16), wuT_ref[...],
                preferred_element_type=jnp.float32)                # (TT, Hp_pad)
    o_ref[0] = (y + x_bf16.astype(jnp.float32) + bu_ref[...]).astype(o_ref.dtype)


def causal_pooled_residual(x, wd, bd, wu, bu, pooling_factor):
    """x: (B, T, H).  wd: (H*q, H*p), bd: (H*q,), wu: (H*p, H*q), bu: (H*p,)."""
    B, T, H = x.shape
    p = pooling_factor
    assert T % p == 0, "sequence length must be divisible by pooling_factor"
    Tp, Hp = T // p, H * p
    Hq = wd.shape[0]
    Hp_pad = _round_up(Hp, 128)     # lane-dense output (unmasked vst)
    Hqp = _round_up(Hq, 128)        # lane-dense z / full MXU tiles

    vmem_cap = _vmem_capacity_bytes()
    TT = _pick_time_tile(Tp, B, Hp_pad, Hqp, vmem_cap)
    tiles_per_batch = _cdiv(Tp, TT)
    Tp_pad = tiles_per_batch * TT
    n_tiles = B * tiles_per_batch

    # --- glue: pooled view, bf16 activations, pad time (per batch) & hidden ---
    xb = x.astype(jnp.bfloat16)
    xdp = jnp.pad(xb.reshape(B, Tp, Hp),
                  ((0, 0), (0, Tp_pad - Tp), (0, Hp_pad - Hp)))
    x3 = xdp.reshape(n_tiles, TT, Hp_pad)

    # --- weights: transposed, zero padded, bf16 operands; f32 biases ---
    wdT = (jnp.zeros((Hp_pad, Hqp), jnp.float32)
           .at[:Hp, :Hq].set(wd.T.astype(jnp.float32)).astype(jnp.bfloat16))
    wuT = (jnp.zeros((Hqp, Hp_pad), jnp.float32)
           .at[:Hq, :Hp].set(wu.T.astype(jnp.float32)).astype(jnp.bfloat16))
    bd2 = jnp.zeros((1, Hqp), jnp.float32).at[:, :Hq].set(bd.astype(jnp.float32))
    bu2 = jnp.zeros((1, Hp_pad), jnp.float32).at[:, :Hp].set(bu.astype(jnp.float32))

    # --- per-tile boundary row, already pushed through the DownPool linear ---
    # prev_z[j] = (last pooled row of tile j-1) @ Wd^T + bd, exactly 0 at batch
    # starts (the zero pad row of the causal shift).  Tiny matmul done in XLA.
    last_rows = xdp.reshape(B, tiles_per_batch, TT, Hp_pad)[:, :, TT - 1, :]
    prev_rows = jnp.concatenate(
        [jnp.zeros((B, 1, Hp_pad), jnp.bfloat16), last_rows[:, :-1, :]], axis=1)
    prev_rows = prev_rows.reshape(n_tiles, Hp_pad)
    prev_z = jnp.dot(prev_rows, wdT, preferred_element_type=jnp.float32) + bd2
    batch_start = (jnp.arange(n_tiles) % tiles_per_batch) == 0
    prev_z = jnp.where(batch_start[:, None], 0.0, prev_z)          # (n_tiles, Hqp) f32

    prev_bytes = n_tiles * Hqp * 4
    prev_resident = prev_bytes <= (2 << 20)
    if prev_resident:
        prev_arr = prev_z                                # whole array resident in VMEM
        prev_shape, prev_index = (n_tiles, Hqp), (lambda j: (0, 0))
    else:
        prev_arr = prev_z.reshape(n_tiles, 1, Hqp)       # tiny per-tile DMA fallback
        prev_shape, prev_index = (1, 1, Hqp), (lambda j: (j, 0, 0))

    # --- VMEM budget: pipelined bf16 i/o tiles + resident weights + in-kernel
    # f32/bf16 intermediates (z, z_shift, y, casts) + headroom ---
    tile_io = TT * Hp_pad * 2
    weight_bytes = 2 * Hp_pad * Hqp * 2
    inter_bytes = TT * (6 * Hqp + 8 * Hp_pad)
    budget = (100 << 20) if vmem_cap >= (96 << 20) else (52 << 20)
    needed = (4 * tile_io + 2 * weight_bytes + inter_bytes
              + (prev_bytes if prev_resident else 8 * Hqp) + (4 << 20))
    vmem_limit = int(min(budget, max(needed, 24 << 20)))

    kernel = functools.partial(_causal_pooled_residual_kernel,
                               prev_resident=prev_resident)

    def _call(single_buffer_weights):
        const_kw = dict(pipeline_mode=pl.Buffered(1)) if single_buffer_weights else {}
        in_specs = [
            pl.BlockSpec(prev_shape, prev_index,
                         **(const_kw if prev_resident else {})),          # prev_z
            pl.BlockSpec((1, TT, Hp_pad), lambda j: (j, 0, 0)),           # input tile
            pl.BlockSpec((Hp_pad, Hqp), lambda j: (0, 0), **const_kw),    # DownPool W^T
            pl.BlockSpec((1, Hqp), lambda j: (0, 0), **const_kw),         # DownPool b
            pl.BlockSpec((Hqp, Hp_pad), lambda j: (0, 0), **const_kw),    # UpPool W^T
            pl.BlockSpec((1, Hp_pad), lambda j: (0, 0), **const_kw),      # UpPool b
        ]
        return pl.pallas_call(
            kernel,
            out_shape=jax.ShapeDtypeStruct((n_tiles, TT, Hp_pad), jnp.bfloat16),
            grid_spec=pltpu.PrefetchScalarGridSpec(
                num_scalar_prefetch=0,
                grid=(n_tiles,),
                in_specs=in_specs,
                out_specs=pl.BlockSpec((1, TT, Hp_pad), lambda j: (j, 0, 0)),
            ),
            compiler_params=pltpu.CompilerParams(
                dimension_semantics=("parallel",),
                vmem_limit_bytes=vmem_limit,
            ),
        )(prev_arr, x3, wdT, bd2, wuT, bu2)

    try:
        out3 = _call(True)           # single-buffered constant-index weights
    except Exception:
        out3 = _call(False)          # this jax version lacks pipeline_mode support

    # --- glue: drop padding, UpPool reshape pooled rows -> (B, T, H) ---
    out = out3.reshape(B, Tp_pad, Hp_pad)[:, :Tp, :Hp].reshape(B, T, H)
    return out.astype(x.dtype)


def _reference_f32(x, wd, bd, wu, bu, p):
    """Pure-f32 JAX reference mirroring the PyTorch forward."""
    B, T, H = x.shape
    xd = x.reshape(B, T // p, H * p)
    z = xd @ wd.T + bd                                      # DownPool linear
    z = jnp.pad(z[:, :-1, :], ((0, 0), (1, 0), (0, 0)))     # causal shift
    y = z @ wu.T + bu                                       # UpPool linear
    return y.reshape(B, T, H) + x                           # reshape + residual


def _reference_mixed(x, wd, bd, wu, bu, p):
    """Reference mirroring the kernel precision (bf16 operands/residual/output)."""
    B, T, H = x.shape
    xb = x.astype(jnp.bfloat16)
    xd = xb.reshape(B, T // p, H * p)
    z = jnp.dot(xd, wd.T.astype(jnp.bfloat16),
                preferred_element_type=jnp.float32) + bd
    z = jnp.pad(z[:, :-1, :], ((0, 0), (1, 0), (0, 0)))
    y = jnp.dot(z.astype(jnp.bfloat16), wu.T.astype(jnp.bfloat16),
                preferred_element_type=jnp.float32) + bu
    out = y.reshape(B, T, H) + xb.astype(jnp.float32).reshape(B, T, H)
    return out.astype(jnp.bfloat16).astype(x.dtype)


if __name__ == "__main__":
    # Small shapes: signal_dim H=16, pooling_factor p=4, expansion_factor q=2,
    # batch B=2, sequence length T=32 (so Tp=8, Hp=64, Hq=32).
    B, T, H = 2, 32, 16
    p, q = 4, 2
    Hp, Hq = H * p, H * q

    key = jax.random.PRNGKey(0)
    kx, kwd, kbd, kwu, kbu = jax.random.split(key, 5)

    x = jax.random.normal(kx, (B, T, H), dtype=jnp.float32)

    # Deterministic nn.Linear-style init: U(-1/sqrt(fan_in), 1/sqrt(fan_in)).
    bound_d = 1.0 / (Hp ** 0.5)
    wd = jax.random.uniform(kwd, (Hq, Hp), jnp.float32, -bound_d, bound_d)
    bd = jax.random.uniform(kbd, (Hq,), jnp.float32, -bound_d, bound_d)
    bound_u = 1.0 / (Hq ** 0.5)
    wu = jax.random.uniform(kwu, (Hp, Hq), jnp.float32, -bound_u, bound_u)
    bu = jax.random.uniform(kbu, (Hp,), jnp.float32, -bound_u, bound_u)

    out = causal_pooled_residual(x, wd, bd, wu, bu, pooling_factor=p)
    out = jax.block_until_ready(out)
    assert out.shape == (B, T, H)

    ref_mixed = _reference_mixed(x, wd, bd, wu, bu, p)
    ref_f32 = _reference_f32(x, wd, bd, wu, bu, p)
    assert jnp.allclose(out, ref_mixed, atol=2e-2, rtol=2e-2), "mismatch vs bf16 reference"
    assert jnp.allclose(out, ref_f32, atol=5e-2, rtol=5e-2), "mismatch vs f32 reference"
    print("KERNEL_OK")
</pallas_src>

<mosaic_0001>
module attributes {stable_mosaic.version = 11 : i64} {
  func.func @_causal_pooled_residual_kernel(%arg0: i32, %arg1: memref<2x128xf32, #tpu.memory_space<vmem>>, %arg2: memref<1x8x128xbf16, #tpu.memory_space<vmem>>, %arg3: memref<128x128xbf16, #tpu.memory_space<vmem>>, %arg4: memref<1x128xf32, #tpu.memory_space<vmem>>, %arg5: memref<128x128xbf16, #tpu.memory_space<vmem>>, %arg6: memref<1x128xf32, #tpu.memory_space<vmem>>, %arg7: memref<1x8x128xbf16, #tpu.memory_space<vmem>>) attributes {dimension_semantics = [#tpu.dimension_semantics<parallel>], iteration_bounds = array<i64: 2>, scalar_prefetch = 0 : i64, scratch_operands = 0 : i64, tpu.core_type = #tpu.core_type<tc>, window_params = [{pipeline_mode = #tpu.pipeline_mode<synchronous>, transform_indices = @transform_0, window_bounds = array<i64: 2, 128>}, {transform_indices = @transform_1, window_bounds = array<i64: 1, 8, 128>}, {pipeline_mode = #tpu.pipeline_mode<synchronous>, transform_indices = @transform_2, window_bounds = array<i64: 128, 128>}, {pipeline_mode = #tpu.pipeline_mode<synchronous>, transform_indices = @transform_3, window_bounds = array<i64: 1, 128>}, {pipeline_mode = #tpu.pipeline_mode<synchronous>, transform_indices = @transform_4, window_bounds = array<i64: 128, 128>}, {pipeline_mode = #tpu.pipeline_mode<synchronous>, transform_indices = @transform_5, window_bounds = array<i64: 1, 128>}, {transform_indices = @transform_6, window_bounds = array<i64: 1, 8, 128>}]} {
    %c0 = arith.constant 0 : index
    %c0_0 = arith.constant 0 : index
    %c0_1 = arith.constant 0 : index
    %0 = vector.load %arg2[%c0, %c0_0, %c0_1] : memref<1x8x128xbf16, #tpu.memory_space<vmem>>, vector<1x8x128xbf16>
    %1 = vector.shape_cast %0 : vector<1x8x128xbf16> to vector<8x128xbf16>
    %c0_2 = arith.constant 0 : index
    %c0_3 = arith.constant 0 : index
    %2 = vector.load %arg3[%c0_2, %c0_3] : memref<128x128xbf16, #tpu.memory_space<vmem>>, vector<128x128xbf16>
    %cst = arith.constant dense<0.000000e+00> : vector<8x128xf32>
    %3 = tpu.matmul %1, %2, %cst {dimension_numbers = #tpu.dot_dimension_numbers<[1], [0], [0], [1], [0, 0, 1, 1], [], []>} : vector<8x128xbf16>, vector<128x128xbf16>, vector<8x128xf32> -> vector<8x128xf32>
    %c0_4 = arith.constant 0 : index
    %c0_5 = arith.constant 0 : index
    %4 = vector.load %arg4[%c0_4, %c0_5] : memref<1x128xf32, #tpu.memory_space<vmem>>, vector<1x128xf32>
    %5 = vector.broadcast %4 : vector<1x128xf32> to vector<8x128xf32>
    %6 = arith.addf %3, %5 : vector<8x128xf32>
    %7 = arith.index_cast %arg0 : i32 to index
    %c0_6 = arith.constant 0 : index
    %8 = vector.load %arg1[%7, %c0_6] : memref<2x128xf32, #tpu.memory_space<vmem>>, vector<1x128xf32>
    %c1_i32 = arith.constant 1 : i32
    %9 = tpu.dynamic_rotate %6 by %c1_i32 dim 0 : vector<8x128xf32>, i32 -> vector<8x128xf32>
    %10 = tpu.iota {dimensions = array<i32: 0>} : vector<8x128xi32>
    %c0_i32 = arith.constant 0 : i32
    %11 = vector.broadcast %c0_i32 : i32 to vector<8x128xi32>
    %12 = arith.cmpi eq, %10, %11 : vector<8x128xi32>
    %13 = vector.shape_cast %8 : vector<1x128xf32> to vector<1x128xf32>
    %14 = vector.broadcast %13 : vector<1x128xf32> to vector<8x128xf32>
    %15 = arith.select %12, %14, %9 : vector<8x128xi1>, vector<8x128xf32>
    %16 = arith.truncf %15 : vector<8x128xf32> to vector<8x128xbf16>
    %c0_7 = arith.constant 0 : index
    %c0_8 = arith.constant 0 : index
    %17 = vector.load %arg5[%c0_7, %c0_8] : memref<128x128xbf16, #tpu.memory_space<vmem>>, vector<128x128xbf16>
    %cst_9 = arith.constant dense<0.000000e+00> : vector<8x128xf32>
    %18 = tpu.matmul %16, %17, %cst_9 {dimension_numbers = #tpu.dot_dimension_numbers<[1], [0], [0], [1], [0, 0, 1, 1], [], []>} : vector<8x128xbf16>, vector<128x128xbf16>, vector<8x128xf32> -> vector<8x128xf32>
    %19 = arith.extf %1 : vector<8x128xbf16> to vector<8x128xf32>
    %20 = arith.addf %18, %19 : vector<8x128xf32>
    %c0_10 = arith.constant 0 : index
    %c0_11 = arith.constant 0 : index
    %21 = vector.load %arg6[%c0_10, %c0_11] : memref<1x128xf32, #tpu.memory_space<vmem>>, vector<1x128xf32>
    %22 = vector.broadcast %21 : vector<1x128xf32> to vector<8x128xf32>
    %23 = arith.addf %20, %22 : vector<8x128xf32>
    %24 = arith.truncf %23 : vector<8x128xf32> to vector<8x128xbf16>
    %c0_12 = arith.constant 0 : index
    %c0_13 = arith.constant 0 : index
    %c0_14 = arith.constant 0 : index
    %25 = vector.load %arg7[%c0_12, %c0_13, %c0_14] : memref<1x8x128xbf16, #tpu.memory_space<vmem>>, vector<1x8x128xbf16>
    %26 = vector.shape_cast %25 : vector<1x8x128xbf16> to vector<8x128xbf16>
    %27 = vector.shape_cast %24 : vector<8x128xbf16> to vector<1x8x128xbf16>
    tpu.vector_store %arg7[%c0_12, %c0_13, %c0_14], %27 {strides = array<i32>} : memref<1x8x128xbf16, #tpu.memory_space<vmem>>, vector<1x8x128xbf16>,
    return
  }
  func.func @transform_0(%arg0: i32) -> (i32, i32) {
    %c0_i32 = arith.constant 0 : i32
    %c0_i32_0 = arith.constant 0 : i32
    %c0_i32_1 = arith.constant 0 : i32
    return %c0_i32, %c0_i32_0 : i32, i32
  }
  func.func @transform_1(%arg0: i32) -> (i32, i32, i32) {
    %c0_i32 = arith.constant 0 : i32
    %c0_i32_0 = arith.constant 0 : i32
    %c0_i32_1 = arith.constant 0 : i32
    return %arg0, %c0_i32, %c0_i32_0 : i32, i32, i32
  }
  func.func @transform_2(%arg0: i32) -> (i32, i32) {
    %c0_i32 = arith.constant 0 : i32
    %c0_i32_0 = arith.constant 0 : i32
    %c0_i32_1 = arith.constant 0 : i32
    return %c0_i32, %c0_i32_0 : i32, i32
  }
  func.func @transform_3(%arg0: i32) -> (i32, i32) {
    %c0_i32 = arith.constant 0 : i32
    %c0_i32_0 = arith.constant 0 : i32
    %c0_i32_1 = arith.constant 0 : i32
    return %c0_i32, %c0_i32_0 : i32, i32
  }
  func.func @transform_4(%arg0: i32) -> (i32, i32) {
    %c0_i32 = arith.constant 0 : i32
    %c0_i32_0 = arith.constant 0 : i32
    %c0_i32_1 = arith.constant 0 : i32
    return %c0_i32, %c0_i32_0 : i32, i32
  }
  func.func @transform_5(%arg0: i32) -> (i32, i32) {
    %c0_i32 = arith.constant 0 : i32
    %c0_i32_0 = arith.constant 0 : i32
    %c0_i32_1 = arith.constant 0 : i32
    return %c0_i32, %c0_i32_0 : i32, i32
  }
  func.func @transform_6(%arg0: i32) -> (i32, i32, i32) {
    %c0_i32 = arith.constant 0 : i32
    %c0_i32_0 = arith.constant 0 : i32
    %c0_i32_1 = arith.constant 0 : i32
    return %arg0, %c0_i32, %c0_i32_0 : i32, i32, i32
  }
}

module attributes {stable_mosaic.version = 11 : i64} {
  func.func @_causal_pooled_residual_kernel(%arg0: i32, %arg1: memref<2x128xf32, #tpu.memory_space<vmem>>, %arg2: memref<1x8x128xbf16, #tpu.memory_space<vmem>>, %arg3: memref<128x128xbf16, #tpu.memory_space<vmem>>, %arg4: memref<1x128xf32, #tpu.memory_space<vmem>>, %arg5: memref<128x128xbf16, #tpu.memory_space<vmem>>, %arg6: memref<1x128xf32, #tpu.memory_space<vmem>>, %arg7: memref<1x8x128xbf16, #tpu.memory_space<vmem>>) attributes {dimension_semantics = [#tpu.dimension_semantics<parallel>], iteration_bounds = array<i64: 2>, scalar_prefetch = 0 : i64, scratch_operands = 0 : i64, tpu.core_type = #tpu.core_type<tc>, window_params = [{pipeline_mode = #tpu.pipeline_mode<synchronous>, transform_indices = @transform_0, window_bounds = array<i64: 2, 128>}, {transform_indices = @transform_1, window_bounds = array<i64: 1, 8, 128>}, {pipeline_mode = #tpu.pipeline_mode<synchronous>, transform_indices = @transform_2, window_bounds = array<i64: 128, 128>}, {pipeline_mode = #tpu.pipeline_mode<synchronous>, transform_indices = @transform_3, window_bounds = array<i64: 1, 128>}, {pipeline_mode = #tpu.pipeline_mode<synchronous>, transform_indices = @transform_4, window_bounds = array<i64: 128, 128>}, {pipeline_mode = #tpu.pipeline_mode<synchronous>, transform_indices = @transform_5, window_bounds = array<i64: 1, 128>}, {transform_indices = @transform_6, window_bounds = array<i64: 1, 8, 128>}]} {
    %c0 = arith.constant 0 : index
    %c0_0 = arith.constant 0 : index
    %c0_1 = arith.constant 0 : index
    %0 = vector.load %arg2[%c0, %c0_0, %c0_1] : memref<1x8x128xbf16, #tpu.memory_space<vmem>>, vector<1x8x128xbf16>
    %1 = vector.shape_cast %0 : vector<1x8x128xbf16> to vector<8x128xbf16>
    %c0_2 = arith.constant 0 : index
    %c0_3 = arith.constant 0 : index
    %2 = vector.load %arg3[%c0_2, %c0_3] : memref<128x128xbf16, #tpu.memory_space<vmem>>, vector<128x128xbf16>
    %cst = arith.constant dense<0.000000e+00> : vector<8x128xf32>
    %3 = tpu.matmul %1, %2, %cst {dimension_numbers = #tpu.dot_dimension_numbers<[1], [0], [0], [1], [0, 0, 1, 1], [], []>} : vector<8x128xbf16>, vector<128x128xbf16>, vector<8x128xf32> -> vector<8x128xf32>
    %c0_4 = arith.constant 0 : index
    %c0_5 = arith.constant 0 : index
    %4 = vector.load %arg4[%c0_4, %c0_5] : memref<1x128xf32, #tpu.memory_space<vmem>>, vector<1x128xf32>
    %5 = vector.broadcast %4 : vector<1x128xf32> to vector<8x128xf32>
    %6 = arith.addf %3, %5 : vector<8x128xf32>
    %7 = arith.index_cast %arg0 : i32 to index
    %c0_6 = arith.constant 0 : index
    %8 = vector.load %arg1[%7, %c0_6] : memref<2x128xf32, #tpu.memory_space<vmem>>, vector<1x128xf32>
    %c1_i32 = arith.constant 1 : i32
    %9 = tpu.dynamic_rotate %6 by %c1_i32 dim 0 : vector<8x128xf32>, i32 -> vector<8x128xf32>
    %10 = tpu.iota {dimensions = array<i32: 0>} : vector<8x128xi32>
    %c0_i32 = arith.constant 0 : i32
    %11 = vector.broadcast %c0_i32 : i32 to vector<8x128xi32>
    %12 = arith.cmpi eq, %10, %11 : vector<8x128xi32>
    %13 = vector.shape_cast %8 : vector<1x128xf32> to vector<1x128xf32>
    %14 = vector.broadcast %13 : vector<1x128xf32> to vector<8x128xf32>
    %15 = arith.select %12, %14, %9 : vector<8x128xi1>, vector<8x128xf32>
    %16 = arith.truncf %15 : vector<8x128xf32> to vector<8x128xbf16>
    %c0_7 = arith.constant 0 : index
    %c0_8 = arith.constant 0 : index
    %17 = vector.load %arg5[%c0_7, %c0_8] : memref<128x128xbf16, #tpu.memory_space<vmem>>, vector<128x128xbf16>
    %cst_9 = arith.constant dense<0.000000e+00> : vector<8x128xf32>
    %18 = tpu.matmul %16, %17, %cst_9 {dimension_numbers = #tpu.dot_dimension_numbers<[1], [0], [0], [1], [0, 0, 1, 1], [], []>} : vector<8x128xbf16>, vector<128x128xbf16>, vector<8x128xf32> -> vector<8x128xf32>
    %19 = arith.extf %1 : vector<8x128xbf16> to vector<8x128xf32>
    %20 = arith.addf %18, %19 : vector<8x128xf32>
    %c0_10 = arith.constant 0 : index
    %c0_11 = arith.constant 0 : index
    %21 = vector.load %arg6[%c0_10, %c0_11] : memref<1x128xf32, #tpu.memory_space<vmem>>, vector<1x128xf32>
    %22 = vector.broadcast %21 : vector<1x128xf32> to vector<8x128xf32>
    %23 = arith.addf %20, %22 : vector<8x128xf32>
    %24 = arith.truncf %23 : vector<8x128xf32> to vector<8x128xbf16>
    %c0_12 = arith.constant 0 : index
    %c0_13 = arith.constant 0 : index
    %c0_14 = arith.constant 0 : index
    %25 = vector.load %arg7[%c0_12, %c0_13, %c0_14] : memref<1x8x128xbf16, #tpu.memory_space<vmem>>, vector<1x8x128xbf16>
    %26 = vector.shape_cast %25 : vector<1x8x128xbf16> to vector<8x128xbf16>
    %27 = vector.shape_cast %24 : vector<8x128xbf16> to vector<1x8x128xbf16>
    tpu.vector_store %arg7[%c0_12, %c0_13, %c0_14], %27 {strides = array<i32>} : memref<1x8x128xbf16, #tpu.memory_space<vmem>>, vector<1x8x128xbf16>,
    return
  }
  func.func @transform_0(%arg0: i32) -> (i32, i32) {
    %c0_i32 = arith.constant 0 : i32
    %c0_i32_0 = arith.constant 0 : i32
    %c0_i32_1 = arith.constant 0 : i32
    return %c0_i32, %c0_i32_0 : i32, i32
  }
  func.func @transform_1(%arg0: i32) -> (i32, i32, i32) {
    %c0_i32 = arith.constant 0 : i32
    %c0_i32_0 = arith.constant 0 : i32
    %c0_i32_1 = arith.constant 0 : i32
    return %arg0, %c0_i32, %c0_i32_0 : i32, i32, i32
  }
  func.func @transform_2(%arg0: i32) -> (i32, i32) {
    %c0_i32 = arith.constant 0 : i32
    %c0_i32_0 = arith.constant 0 : i32
    %c0_i32_1 = arith.constant 0 : i32
    return %c0_i32, %c0_i32_0 : i32, i32
  }
  func.func @transform_3(%arg0: i32) -> (i32, i32) {
    %c0_i32 = arith.constant 0 : i32
    %c0_i32_0 = arith.constant 0 : i32
    %c0_i32_1 = arith.constant 0 : i32
    return %c0_i32, %c0_i32_0 : i32, i32
  }
  func.func @transform_4(%arg0: i32) -> (i32, i32) {
    %c0_i32 = arith.constant 0 : i32
    %c0_i32_0 = arith.constant 0 : i32
    %c0_i32_1 = arith.constant 0 : i32
    return %c0_i32, %c0_i32_0 : i32, i32
  }
  func.func @transform_5(%arg0: i32) -> (i32, i32) {
    %c0_i32 = arith.constant 0 : i32
    %c0_i32_0 = arith.constant 0 : i32
    %c0_i32_1 = arith.constant 0 : i32
    return %c0_i32, %c0_i32_0 : i32, i32
  }
  func.func @transform_6(%arg0: i32) -> (i32, i32, i32) {
    %c0_i32 = arith.constant 0 : i32
    %c0_i32_0 = arith.constant 0 : i32
    %c0_i32_1 = arith.constant 0 : i32
    return %arg0, %c0_i32, %c0_i32_0 : i32, i32, i32
  }
}

</mosaic_0001>

<llo_original>
// kernel: tpu_custom_call.1
$region0: #{tpu_custom_call.1}
  #allocation0 [shape = 'u32[]', space=smem, size = 0x4, offset = 0x4, fixed_abs, tag = 'smem constant byte address 0x4 - core index']
  #allocation1 [shape = 'u32[144,128]{1,0:T(1,128)}', space=vmem, size = 0x12000, scoped, tag = 'internal scratch']
  %s0 = inlined_call_operand.hbm [shape: f32[2,128], index: 0, kind: input, shape index: {}]
  %s1 = inlined_call_operand.hbm [shape: bf16[2,8,128], index: 1, kind: input, shape index: {}]
  %s2 = inlined_call_operand.hbm [shape: bf16[128,128], index: 2, kind: input, shape index: {}]
  %s3 = inlined_call_operand.vmem [shape: f32[1,128], index: 3, kind: input, shape index: {}]
  %s4 = inlined_call_operand.hbm [shape: bf16[128,128], index: 4, kind: input, shape index: {}]
  %s5 = inlined_call_operand.vmem [shape: f32[1,128], index: 5, kind: input, shape index: {}]
  %s6 = inlined_call_operand.hbm [shape: bf16[2,8,128], index: 6, kind: output, shape index: {}]
  %s7 = sld [smem:[#allocation0]]
  $region73: #{tpu_custom_call.1} parent=0
    _
  %s9 = ssub.s32 1, %s7
  %s10 = scalar_select 0, %s9, %s7
  $region1: #{tpu_custom_call.1} parent=0
    #allocation2 [shape = 'u8[1024]{0}', space=vmem, size = 0x400, scoped, tag = 'input window, operand 0, single buffered']
    #allocation3 [shape = 's32[2]{0}', space=sflag, size = 0x8, scoped, tag = 'scoped memory for tpu_custom_call.1']
    #allocation4 [shape = 's32[2]{0}', space=sflag, size = 0x8, scoped, tag = 'scoped memory for tpu_custom_call.1']
    #allocation5 [shape = 'u8[4096]{0}', space=vmem, size = 0x1000, scoped, tag = 'input window, operand 1']
    #allocation6 [shape = 's32[2]{0}', space=sflag, size = 0x8, scoped, tag = 'scoped memory for tpu_custom_call.1']
    #allocation7 [shape = 'u8[32768]{0}', space=vmem, size = 0x8000, scoped, tag = 'input window, operand 2, single buffered']
    #allocation8 [shape = 'u8[32768]{0}', space=vmem, size = 0x8000, scoped, tag = 'input window, operand 4, single buffered']
    #allocation9 [shape = 's32[1]{0}', space=sflag, size = 0x4, scoped, tag = 'scoped memory for tpu_custom_call.1']
    #allocation10 [shape = 'u8[4096]{0}', space=vmem, size = 0x1000, scoped, tag = 'output window, operand 0']
    %11 = vsyncpa [#allocation3], 0
    %12 = vsyncpa [#allocation6], 0
    %s13 = scalar_lea.sflag [#allocation6], 1
    %14 = vsyncpa %s13, 0
    %15 = vsyncpa [#allocation9], 0
    %16 = vsyncpa [#allocation4], 0
    %s17 = scalar_lea.sflag [#allocation4], 1
    %18 = vsyncpa %s17, 0
    loop: start=0, step=1, limit=4
    $region2: #{tpu_custom_call.1} parent=1 // loop_pre_header
      _
    $region3: #{tpu_custom_call.1} parent=1 // loop_header
      %s20 = sphi 0, %s24
      %p21 = scmp.ge.s32.totalorder %s20, 4
      %s28 = sphi 0, %s28
      %s30 = sphi 0, %s28
      %s31 = sphi 0, %s30
      %s45 = sphi 0, %s31
      %s51 = sphi 0, %s53
      %s54 = sphi 0, %s51
      %s55 = sphi 0, %s54
      %s71 = sphi 0, %s55
      %s75 = sphi 0, %s75
      %s77 = sphi 0, %s75
      %s78 = sphi 0, %s77
      %s92 = sphi 0, %s78
      %s96 = sphi 0, %s96
      %s98 = sphi 0, %s96
      %s99 = sphi 0, %s98
      %s113 = sphi 0, %s99
      %s117 = sphi 0, %s117
      %s119 = sphi 0, %s117
      %s120 = sphi 0, %s119
      %s134 = sphi 0, %s120
      %s138 = sphi 0, %s138
      %s140 = sphi 0, %s138
      %s141 = sphi 0, %s140
      %s155 = sphi 0, %s141
      %s161 = sphi 0, %s163
      %s164 = sphi 0, %s161
      %s165 = sphi 0, %s164
      %s181 = sphi 0, %s165
    $region4: #{tpu_custom_call.1} parent=1 // loop_header_branch
      %23 = sbr.rel (%p21) target = $region8
    $region5: #{tpu_custom_call.1} parent=1 // loop_body
      %s25 = ssub.s32 %s20, 1
      %s26 = ssub.s32 %s20, 2
      %s27 = sadd.s32 %s20, 1
      %s29 = sadd.s32 %s28, 1
      %p32 = scmp.eq.s32.totalorder %s20, 1
      %p33 = scmp.ne.s32.totalorder %s28, %s30
      %p34 = scmp.eq.s32.totalorder %s20, 0
      %p35 = por %p33, %p34
      %p36 = scmp.ne.s32.totalorder %s28, %s30
      %p37 = scmp.eq.s32.totalorder %s25, 1
      %p38 = por %p36, %p37
      %p39 = scmp.ne.s32.totalorder %s30, %s31
      %p40 = scmp.eq.s32.totalorder %s25, 0
      %p41 = por %p39, %p40
      %p42 = scmp.ne.s32.totalorder %s30, %s31
      %p43 = scmp.eq.s32.totalorder %s26, 1
      %p44 = por %p42, %p43
      %p46 = scmp.ne.s32.totalorder %s31, %s45
      %p47 = scmp.eq.s32.totalorder %s26, 0
      %p48 = por %p46, %p47
      %s49 = ssub.s32 %s20, %s27
      %p50 = scmp.eq.s32.totalorder %s49, 0
      %s52 = sadd.s32 %s51, 1
      %s53 = scalar_select %p50, %s51, %s52
      %p56 = pneg %p50
      %p57 = scmp.eq.s32.totalorder %s20, 1
      %p58 = por %p56, %p57
      %p59 = scmp.ne.s32.totalorder %s51, %s54
      %p60 = scmp.eq.s32.totalorder %s20, 0
      %p61 = por %p59, %p60
      %p62 = scmp.ne.s32.totalorder %s51, %s54
      %p63 = scmp.eq.s32.totalorder %s25, 1
      %p64 = por %p62, %p63
      %p65 = scmp.ne.s32.totalorder %s54, %s55
      %p66 = scmp.eq.s32.totalorder %s25, 0
      %p67 = por %p65, %p66
      %p68 = scmp.ne.s32.totalorder %s54, %s55
      %p69 = scmp.eq.s32.totalorder %s26, 1
      %p70 = por %p68, %p69
      %p72 = scmp.ne.s32.totalorder %s55, %s71
      %p73 = scmp.eq.s32.totalorder %s26, 0
      %p74 = por %p72, %p73
      %s76 = sadd.s32 %s75, 1
      %p79 = scmp.eq.s32.totalorder %s20, 1
      %p80 = scmp.ne.s32.totalorder %s75, %s77
      %p81 = scmp.eq.s32.totalorder %s20, 0
      %p82 = por %p80, %p81
      %p83 = scmp.ne.s32.totalorder %s75, %s77
      %p84 = scmp.eq.s32.totalorder %s25, 1
      %p85 = por %p83, %p84
      %p86 = scmp.ne.s32.totalorder %s77, %s78
      %p87 = scmp.eq.s32.totalorder %s25, 0
      %p88 = por %p86, %p87
      %p89 = scmp.ne.s32.totalorder %s77, %s78
      %p90 = scmp.eq.s32.totalorder %s26, 1
      %p91 = por %p89, %p90
      %p93 = scmp.ne.s32.totalorder %s78, %s92
      %p94 = scmp.eq.s32.totalorder %s26, 0
      %p95 = por %p93, %p94
      %s97 = sadd.s32 %s96, 1
      %p100 = scmp.eq.s32.totalorder %s20, 1
      %p101 = scmp.ne.s32.totalorder %s96, %s98
      %p102 = scmp.eq.s32.totalorder %s20, 0
      %p103 = por %p101, %p102
      %p104 = scmp.ne.s32.totalorder %s96, %s98
      %p105 = scmp.eq.s32.totalorder %s25, 1
      %p106 = por %p104, %p105
      %p107 = scmp.ne.s32.totalorder %s98, %s99
      %p108 = scmp.eq.s32.totalorder %s25, 0
      %p109 = por %p107, %p108
      %p110 = scmp.ne.s32.totalorder %s98, %s99
      %p111 = scmp.eq.s32.totalorder %s26, 1
      %p112 = por %p110, %p111
      %p114 = scmp.ne.s32.totalorder %s99, %s113
      %p115 = scmp.eq.s32.totalorder %s26, 0
      %p116 = por %p114, %p115
      %s118 = sadd.s32 %s117, 1
      %p121 = scmp.eq.s32.totalorder %s20, 1
      %p122 = scmp.ne.s32.totalorder %s117, %s119
      %p123 = scmp.eq.s32.totalorder %s20, 0
      %p124 = por %p122, %p123
      %p125 = scmp.ne.s32.totalorder %s117, %s119
      %p126 = scmp.eq.s32.totalorder %s25, 1
      %p127 = por %p125, %p126
      %p128 = scmp.ne.s32.totalorder %s119, %s120
      %p129 = scmp.eq.s32.totalorder %s25, 0
      %p130 = por %p128, %p129
      %p131 = scmp.ne.s32.totalorder %s119, %s120
      %p132 = scmp.eq.s32.totalorder %s26, 1
      %p133 = por %p131, %p132
      %p135 = scmp.ne.s32.totalorder %s120, %s134
      %p136 = scmp.eq.s32.totalorder %s26, 0
      %p137 = por %p135, %p136
      %s139 = sadd.s32 %s138, 1
      %p142 = scmp.eq.s32.totalorder %s20, 1
      %p143 = scmp.ne.s32.totalorder %s138, %s140
      %p144 = scmp.eq.s32.totalorder %s20, 0
      %p145 = por %p143, %p144
      %p146 = scmp.ne.s32.totalorder %s138, %s140
      %p147 = scmp.eq.s32.totalorder %s25, 1
      %p148 = por %p146, %p147
      %p149 = scmp.ne.s32.totalorder %s140, %s141
      %p150 = scmp.eq.s32.totalorder %s25, 0
      %p151 = por %p149, %p150
      %p152 = scmp.ne.s32.totalorder %s140, %s141
      %p153 = scmp.eq.s32.totalorder %s26, 1
      %p154 = por %p152, %p153
      %p156 = scmp.ne.s32.totalorder %s141, %s155
      %p157 = scmp.eq.s32.totalorder %s26, 0
      %p158 = por %p156, %p157
      %s159 = ssub.s32 %s20, %s27
      %p160 = scmp.eq.s32.totalorder %s159, 0
      %s162 = sadd.s32 %s161, 1
      %s163 = scalar_select %p160, %s161, %s162
      %p166 = pneg %p160
      %p167 = scmp.eq.s32.totalorder %s20, 1
      %p168 = por %p166, %p167
      %p169 = scmp.ne.s32.totalorder %s161, %s164
      %p170 = scmp.eq.s32.totalorder %s20, 0
      %p171 = por %p169, %p170
      %p172 = scmp.ne.s32.totalorder %s161, %s164
      %p173 = scmp.eq.s32.totalorder %s25, 1
      %p174 = por %p172, %p173
      %p175 = scmp.ne.s32.totalorder %s164, %s165
      %p176 = scmp.eq.s32.totalorder %s25, 0
      %p177 = por %p175, %p176
      %p178 = scmp.ne.s32.totalorder %s164, %s165
      %p179 = scmp.eq.s32.totalorder %s26, 1
      %p180 = por %p178, %p179
      %p182 = scmp.ne.s32.totalorder %s165, %s181
      %p183 = scmp.eq.s32.totalorder %s26, 0
      %p184 = por %p182, %p183
      %p185 = scmp.le.s32.totalorder 1, %s20
      %p186 = scmp.lt.s32.totalorder %s20, 3
      %p187 = pnand %p185, %p186
      %p188 = pneg %p187
      // Predicated region
      $region9: #{tpu_custom_call.1} parent=5 // pred_check
        _
      $region10: #{tpu_custom_call.1} parent=5 // pred_check_branch
        %190 = sbr.rel (%p187) target = $region12
      $region11: #{tpu_custom_call.1} parent=5 // pred_region
        %s191 = ssub.s32 %s20, 1
        // Predicated region
        $region13: #{tpu_custom_call.1} parent=11 // pred_check
          %p192 = pneg %p41
        $region14: #{tpu_custom_call.1} parent=11 // pred_check_branch
          %194 = sbr.rel (%p192) target = $region16
        $region15: #{tpu_custom_call.1} parent=11 // pred_region
          %s196 = ssub.s32 32, 32
          %197 = vsyncadd [#allocation3], %s196
          %s199 = sshll.u32 [#allocation2], 4
          %s200 = int_to_ptr.vmem [resolvable:$true] %s199
          %202 = dma.hbm_to_vmem [thread:$0]  %s0, 32, %s200, [#allocation3]
        $region16: #{tpu_custom_call.1} parent=11 // pred_fallthru
          _
        // Predicated region
        $region17: #{tpu_custom_call.1} parent=11 // pred_check
          %p203 = pneg %p88
        $region18: #{tpu_custom_call.1} parent=11 // pred_check_branch
          %205 = sbr.rel (%p203) target = $region20
        $region19: #{tpu_custom_call.1} parent=11 // pred_region
          %s207 = ssub.s32 1024, 1024
          %208 = vsyncadd [#allocation6], %s207
          %s209 = sshll.u32 [#allocation7], 4
          %s210 = int_to_ptr.vmem [resolvable:$true] %s209
          %215 = dma.hbm_to_vmem [thread:$0]  %s2, 1024, %s210, [#allocation6], 64, 64, 4
        $region20: #{tpu_custom_call.1} parent=11 // pred_fallthru
          _
        // Predicated region
        $region21: #{tpu_custom_call.1} parent=11 // pred_check
          %p216 = pneg %p109
        $region22: #{tpu_custom_call.1} parent=11 // pred_check_branch
          %218 = sbr.rel (%p216) target = $region24
        $region23: #{tpu_custom_call.1} parent=11 // pred_region
          _
        $region24: #{tpu_custom_call.1} parent=11 // pred_fallthru
          _
        // Predicated region
        $region25: #{tpu_custom_call.1} parent=11 // pred_check
          %p219 = pneg %p130
        $region26: #{tpu_custom_call.1} parent=11 // pred_check_branch
          %221 = sbr.rel (%p219) target = $region28
        $region27: #{tpu_custom_call.1} parent=11 // pred_region
          %s223 = ssub.s32 1024, 1024
          %224 = vsyncadd [#allocation9], %s223
          %s225 = sshll.u32 [#allocation8], 4
          %s226 = int_to_ptr.vmem [resolvable:$true] %s225
          %231 = dma.hbm_to_vmem [thread:$0]  %s4, 1024, %s226, [#allocation9], 64, 64, 4
        $region28: #{tpu_custom_call.1} parent=11 // pred_fallthru
          _
        // Predicated region
        $region29: #{tpu_custom_call.1} parent=11 // pred_check
          %p232 = pneg %p151
        $region30: #{tpu_custom_call.1} parent=11 // pred_check_branch
          %234 = sbr.rel (%p232) target = $region32
        $region31: #{tpu_custom_call.1} parent=11 // pred_region
          _
        $region32: #{tpu_custom_call.1} parent=11 // pred_fallthru
          _
      $region12: #{tpu_custom_call.1} parent=5 // pred_fallthru
        _
      %p235 = scmp.lt.s32.totalorder %s20, 2
      // Predicated region
      $region33: #{tpu_custom_call.1} parent=5 // pred_check
        %p236 = pneg %p235
      $region34: #{tpu_custom_call.1} parent=5 // pred_check_branch
        %238 = sbr.rel (%p236) target = $region36
      $region35: #{tpu_custom_call.1} parent=5 // pred_region
        // Predicated region
        $region37: #{tpu_custom_call.1} parent=35 // pred_check
          %p239 = pneg %p61
        $region38: #{tpu_custom_call.1} parent=35 // pred_check_branch
          %241 = sbr.rel (%p239) target = $region40
        $region39: #{tpu_custom_call.1} parent=35 // pred_region
          %s242 = sand.u32 %s20, 1
          %s243 = scalar_lea.sflag [#allocation6], %s242
          %s244 = sand.u32 %s51, 1
          %s245 = smul.addr %s244, 4
          %s246 = scalar_lea.vmem [#allocation5], %s245
          %s248 = ssub.s32 64, 64
          %249 = vsyncadd %s243, %s248
          %s250 = smul.addr %s20, 64
          %s251 = scalar_lea.hbm %s1, %s250
          %s253 = sshll.u32 %s246, 4
          %s254 = int_to_ptr.vmem [resolvable:$true] %s253
          %256 = dma.hbm_to_vmem [thread:$0]  %s251, 64, %s254, %s243
        $region40: #{tpu_custom_call.1} parent=35 // pred_fallthru
          _
      $region36: #{tpu_custom_call.1} parent=5 // pred_fallthru
        _
      %p257 = scmp.le.s32.totalorder 1, %s20
      %p258 = scmp.lt.s32.totalorder %s20, 3
      %p259 = pnand %p257, %p258
      %p260 = pneg %p259
      // Predicated region
      $region41: #{tpu_custom_call.1} parent=5 // pred_check
        _
      $region42: #{tpu_custom_call.1} parent=5 // pred_check_branch
        %262 = sbr.rel (%p259) target = $region44
      $region43: #{tpu_custom_call.1} parent=5 // pred_region
        %s263 = ssub.s32 %s20, 1
        // Predicated region
        $region45: #{tpu_custom_call.1} parent=43 // pred_check
          %p264 = pneg %p41
        $region46: #{tpu_custom_call.1} parent=43 // pred_check_branch
          %266 = sbr.rel (%p264) target = $region48
        $region47: #{tpu_custom_call.1} parent=43 // pred_region
          %267 = dma.done [#allocation3], 32
        $region48: #{tpu_custom_call.1} parent=43 // pred_fallthru
          _
        %s268 = sand.u32 %s25, 1
        %s269 = scalar_lea.sflag [#allocation6], %s268
        %s270 = sand.u32 %s54, 1
        %s271 = smul.addr %s270, 4
        %s272 = scalar_lea.vmem [#allocation5], %s271
        // Predicated region
        $region49: #{tpu_custom_call.1} parent=43 // pred_check
          %p273 = pneg %p67
        $region50: #{tpu_custom_call.1} parent=43 // pred_check_branch
          %275 = sbr.rel (%p273) target = $region52
        $region51: #{tpu_custom_call.1} parent=43 // pred_region
          %276 = dma.done %s269, 64
        $region52: #{tpu_custom_call.1} parent=43 // pred_fallthru
          _
        // Predicated region
        $region53: #{tpu_custom_call.1} parent=43 // pred_check
          %p277 = pneg %p88
        $region54: #{tpu_custom_call.1} parent=43 // pred_check_branch
          %279 = sbr.rel (%p277) target = $region56
        $region55: #{tpu_custom_call.1} parent=43 // pred_region
          %280 = dma.done [#allocation6], 1024
        $region56: #{tpu_custom_call.1} parent=43 // pred_fallthru
          _
        // Predicated region
        $region57: #{tpu_custom_call.1} parent=43 // pred_check
          %p281 = pneg %p130
        $region58: #{tpu_custom_call.1} parent=43 // pred_check_branch
          %283 = sbr.rel (%p281) target = $region60
        $region59: #{tpu_custom_call.1} parent=43 // pred_region
          %284 = dma.done [#allocation9], 1024
        $region60: #{tpu_custom_call.1} parent=43 // pred_fallthru
          _
        %p285 = pneg %p41
        %p286 = pneg %p38
        %s287 = sand.u32 %s25, 1
        %s288 = scalar_lea.sflag [#allocation6], %s287
        %s289 = sand.u32 %s54, 1
        %s290 = smul.addr %s289, 4
        %s291 = scalar_lea.vmem [#allocation5], %s290
        %p292 = pneg %p67
        %p293 = pneg %p64
        %p294 = pneg %p88
        %p295 = pneg %p85
        %p296 = pneg %p109
        %p297 = pneg %p106
        %p298 = pneg %p130
        %p299 = pneg %p127
        %p300 = pneg %p151
        %p301 = pneg %p148
        %p302 = pneg %p177
        %p303 = pneg %p174
        %s304 = sand.u32 %s164, 1
        %s305 = scalar_lea.sflag [#allocation4], %s304
        %s306 = sand.u32 %s164, 1
        %s307 = smul.addr %s306, 4
        %s308 = scalar_lea.vmem [#allocation10], %s307
        %v310 = vld [vmem:[%s272] sm:$0xf]
        %v311 = vld [vmem:[#allocation7] sm:$0xf]
        %v312 = vld [vmem:[#allocation7 + $0x4] sm:$0xf]
        %v313 = vld [vmem:[#allocation7 + $0x8] sm:$0xf]
        %v314 = vld [vmem:[#allocation7 + $0xc] sm:$0xf]
        %v315 = vld [vmem:[#allocation7 + $0x10] sm:$0xf]
        %v316 = vld [vmem:[#allocation7 + $0x14] sm:$0xf]
        %v317 = vld [vmem:[#allocation7 + $0x18] sm:$0xf]
        %v318 = vld [vmem:[#allocation7 + $0x1c] sm:$0xf]
        %v319 = vld [vmem:[#allocation7 + $0x20] sm:$0xf]
        %v320 = vld [vmem:[#allocation7 + $0x24] sm:$0xf]
        %v321 = vld [vmem:[#allocation7 + $0x28] sm:$0xf]
        %v322 = vld [vmem:[#allocation7 + $0x2c] sm:$0xf]
        %v323 = vld [vmem:[#allocation7 + $0x30] sm:$0xf]
        %v324 = vld [vmem:[#allocation7 + $0x34] sm:$0xf]
        %v325 = vld [vmem:[#allocation7 + $0x38] sm:$0xf]
        %v326 = vld [vmem:[#allocation7 + $0x3c] sm:$0xf]
        %v327 = vld [vmem:[%s3] sm:$0x1]
        %v329 = vlaneseq
        %v330 = vshrl.u32 %v329, 7
        %v331 = vsub.s32 0, %v330
        %v332 = vrot.slane %v327, %v331
        %v350 = vunpack.c.l.b16 %v311
        %v351 = vunpack.c.l.b16 %v312
        %v352 = vunpack.c.l.b16 %v313
        %v353 = vunpack.c.l.b16 %v314
        %v354 = vunpack.c.l.b16 %v315
        %v355 = vunpack.c.l.b16 %v316
        %v356 = vunpack.c.l.b16 %v317
        %v357 = vunpack.c.l.b16 %v318
        %v358 = vunpack.c.l.b16 %v319
        %v359 = vunpack.c.l.b16 %v320
        %v360 = vunpack.c.l.b16 %v321
        %v361 = vunpack.c.l.b16 %v322
        %v362 = vunpack.c.l.b16 %v323
        %v363 = vunpack.c.l.b16 %v324
        %v364 = vunpack.c.l.b16 %v325
        %v365 = vunpack.c.l.b16 %v326
        %v366 = vpack.c.b16 %v351, %v350
        %v367 = vpack.c.b16 %v353, %v352
        %v368 = vpack.c.b16 %v355, %v354
        %v369 = vpack.c.b16 %v357, %v356
        %v370 = vpack.c.b16 %v359, %v358
        %v371 = vpack.c.b16 %v361, %v360
        %v372 = vpack.c.b16 %v363, %v362
        %v373 = vpack.c.b16 %v365, %v364
        %382 = vmatprep.subr.bf16.mxu0 0
        %383 = vmatpush1.bf16.msra.mxu0 %v373
        %384 = vmatprep.subr.bf16.mxu0 0
        %385 = vmatpush1.bf16.msra.mxu0 %v372
        %386 = vmatprep.subr.bf16.mxu0 0
        %387 = vmatpush1.bf16.msra.mxu0 %v371
        %388 = vmatprep.subr.bf16.mxu0 0
        %389 = vmatpush1.bf16.msra.mxu0 %v370
        %390 = vmatprep.subr.bf16.mxu0 0
        %391 = vmatpush1.bf16.msra.mxu0 %v369
        %392 = vmatprep.subr.bf16.mxu0 0
        %393 = vmatpush1.bf16.msra.mxu0 %v368
        %394 = vmatprep.subr.bf16.mxu0 0
        %395 = vmatpush1.bf16.msra.mxu0 %v367
        %396 = vmatprep.subr.bf16.mxu0 0
        %397 = vmatpush1.bf16.msra.mxu0 %v366
        %398 = vmatprep.subr.bf16.mxu0 0
        %399 = vmatpush2.bf16.msra.mxu0 0
        %400 = vmatprep.subr.bf16.mxu0 0
        %401 = vmatpush2.bf16.msra.mxu0 0
        %402 = vmatprep.subr.bf16.mxu0 0
        %403 = vmatpush2.bf16.msra.mxu0 0
        %404 = vmatprep.subr.bf16.mxu0 0
        %405 = vmatpush2.bf16.msra.mxu0 0
        %406 = vmatprep.subr.bf16.mxu0 0
        %407 = vmatpush2.bf16.msra.mxu0 0
        %408 = vmatprep.subr.bf16.mxu0 0
        %409 = vmatpush2.bf16.msra.mxu0 0
        %410 = vmatprep.subr.bf16.mxu0 0
        %411 = vmatpush2.bf16.msra.mxu0 0
        %412 = vmatprep.subr.bf16.mxu0 0
        %413 = vmatpush2.bf16.msra.mxu0 0
        %414 = vmatprep.mubr.bf16.mxu0 0
        %415 = vmatmul.mubr.bf16.gmra.mxu0 %v310
        %v416 = vpop.f32.mrf.mxu0
        %v417 = vadd.f32 %v332, %v416
        %v418 = vpop.f32.mrf.mxu0
        %v419 = vpop.f32.mrf.mxu0
        %v420 = vpop.f32.mrf.mxu0
        %421 = vdwg.mxu0
        %s422 = scalar_lea.vmem [#allocation2], %s25
        %v423 = vld [vmem:[%s422] sm:$0x1]
        %v424 = vrot.slane %v417, 7
        %v425 = vlaneseq
        %v426 = vshrl.u32 %v425, 7
        %vm427 = vcmp.eq.s32.totalorder %v426, 0
        %v428 = vlaneseq
        %v429 = vshrl.u32 %v428, 7
        %v430 = vsub.s32 0, %v429
        %v431 = vrot.slane %v423, %v430
        %v432 = vsel %vm427, %v431, %v424
        %v433 = vpack.c.bf16 %v432, %v432
        %v434 = vld [vmem:[#allocation8] sm:$0xf]
        %v435 = vld [vmem:[#allocation8 + $0x4] sm:$0xf]
        %v436 = vld [vmem:[#allocation8 + $0x8] sm:$0xf]
        %v437 = vld [vmem:[#allocation8 + $0xc] sm:$0xf]
        %v438 = vld [vmem:[#allocation8 + $0x10] sm:$0xf]
        %v439 = vld [vmem:[#allocation8 + $0x14] sm:$0xf]
        %v440 = vld [vmem:[#allocation8 + $0x18] sm:$0xf]
        %v441 = vld [vmem:[#allocation8 + $0x1c] sm:$0xf]
        %v442 = vld [vmem:[#allocation8 + $0x20] sm:$0xf]
        %v443 = vld [vmem:[#allocation8 + $0x24] sm:$0xf]
        %v444 = vld [vmem:[#allocation8 + $0x28] sm:$0xf]
        %v445 = vld [vmem:[#allocation8 + $0x2c] sm:$0xf]
        %v446 = vld [vmem:[#allocation8 + $0x30] sm:$0xf]
        %v447 = vld [vmem:[#allocation8 + $0x34] sm:$0xf]
        %v448 = vld [vmem:[#allocation8 + $0x38] sm:$0xf]
        %v449 = vld [vmem:[#allocation8 + $0x3c] sm:$0xf]
        %v450 = vunpack.c.l.bf16 %v310
        %v467 = vunpack.c.l.b16 %v434
        %v468 = vunpack.c.l.b16 %v435
        %v469 = vunpack.c.l.b16 %v436
        %v470 = vunpack.c.l.b16 %v437
        %v471 = vunpack.c.l.b16 %v438
        %v472 = vunpack.c.l.b16 %v439
        %v473 = vunpack.c.l.b16 %v440
        %v474 = vunpack.c.l.b16 %v441
        %v475 = vunpack.c.l.b16 %v442
        %v476 = vunpack.c.l.b16 %v443
        %v477 = vunpack.c.l.b16 %v444
        %v478 = vunpack.c.l.b16 %v445
        %v479 = vunpack.c.l.b16 %v446
        %v480 = vunpack.c.l.b16 %v447
        %v481 = vunpack.c.l.b16 %v448
        %v482 = vunpack.c.l.b16 %v449
        %v483 = vpack.c.b16 %v468, %v467
        %v484 = vpack.c.b16 %v470, %v469
        %v485 = vpack.c.b16 %v472, %v471
        %v486 = vpack.c.b16 %v474, %v473
        %v487 = vpack.c.b16 %v476, %v475
        %v488 = vpack.c.b16 %v478, %v477
        %v489 = vpack.c.b16 %v480, %v479
        %v490 = vpack.c.b16 %v482, %v481
        %499 = vmatprep.subr.bf16.mxu0 0
        %500 = vmatpush1.bf16.msra.mxu0 %v490
        %501 = vmatprep.subr.bf16.mxu0 0
        %502 = vmatpush1.bf16.msra.mxu0 %v489
        %503 = vmatprep.subr.bf16.mxu0 0
        %504 = vmatpush1.bf16.msra.mxu0 %v488
        %505 = vmatprep.subr.bf16.mxu0 0
        %506 = vmatpush1.bf16.msra.mxu0 %v487
        %507 = vmatprep.subr.bf16.mxu0 0
        %508 = vmatpush1.bf16.msra.mxu0 %v486
        %509 = vmatprep.subr.bf16.mxu0 0
        %510 = vmatpush1.bf16.msra.mxu0 %v485
        %511 = vmatprep.subr.bf16.mxu0 0
        %512 = vmatpush1.bf16.msra.mxu0 %v484
        %513 = vmatprep.subr.bf16.mxu0 0
        %514 = vmatpush1.bf16.msra.mxu0 %v483
        %515 = vmatprep.subr.bf16.mxu0 0
        %516 = vmatpush2.bf16.msra.mxu0 0
        %517 = vmatprep.subr.bf16.mxu0 0
        %518 = vmatpush2.bf16.msra.mxu0 0
        %519 = vmatprep.subr.bf16.mxu0 0
        %520 = vmatpush2.bf16.msra.mxu0 0
        %521 = vmatprep.subr.bf16.mxu0 0
        %522 = vmatpush2.bf16.msra.mxu0 0
        %523 = vmatprep.subr.bf16.mxu0 0
        %524 = vmatpush2.bf16.msra.mxu0 0
        %525 = vmatprep.subr.bf16.mxu0 0
        %526 = vmatpush2.bf16.msra.mxu0 0
        %527 = vmatprep.subr.bf16.mxu0 0
        %528 = vmatpush2.bf16.msra.mxu0 0
        %529 = vmatprep.subr.bf16.mxu0 0
        %530 = vmatpush2.bf16.msra.mxu0 0
        %531 = vmatprep.mubr.bf16.mxu0 0
        %532 = vmatmul.mubr.bf16.gmra.mxu0 %v433
        %v533 = vpop.f32.mrf.mxu0
        %v534 = vadd.f32 %v450, %v533
        %v535 = vpop.f32.mrf.mxu0
        %v536 = vpop.f32.mrf.mxu0
        %v537 = vpop.f32.mrf.mxu0
        %538 = vdwg.mxu0
        %v539 = vld [vmem:[%s5] sm:$0x1]
        %v541 = vlaneseq
        %v542 = vshrl.u32 %v541, 7
        %v543 = vsub.s32 0, %v542
        %v544 = vrot.slane %v539, %v543
        %v546 = vadd.f32 %v534, %v544
        %v547 = vpack.c.bf16 %v546, %v546
        %548 = vst [vmem:[%s308] sm:$0xf] %v547
        %s549 = sand.u32 %s164, 1
        %s550 = scalar_lea.sflag [#allocation4], %s549
        %s551 = sand.u32 %s164, 1
        %s552 = smul.addr %s551, 4
        %s553 = scalar_lea.vmem [#allocation10], %s552
        // Predicated region
        $region61: #{tpu_custom_call.1} parent=43 // pred_check
          %p554 = pneg %p174
        $region62: #{tpu_custom_call.1} parent=43 // pred_check_branch
          %556 = sbr.rel (%p554) target = $region64
        $region63: #{tpu_custom_call.1} parent=43 // pred_region
          %s558 = ssub.s32 64, 64
          %559 = vsyncadd %s550, %s558
          %s560 = smul.addr %s25, 64
          %s561 = scalar_lea.hbm %s6, %s560
          %s563 = sshll.u32 %s553, 4
          %s564 = int_to_ptr.vmem [resolvable:$true] %s563
          %566 = dma.vmem_to_hbm [thread:$0]  %s564, 64, %s561, %s550
        $region64: #{tpu_custom_call.1} parent=43 // pred_fallthru
          _
      $region44: #{tpu_custom_call.1} parent=5 // pred_fallthru
        _
      %p567 = scmp.le.s32.totalorder 2, %s20
      // Predicated region
      $region65: #{tpu_custom_call.1} parent=5 // pred_check
        %p568 = pneg %p567
      $region66: #{tpu_custom_call.1} parent=5 // pred_check_branch
        %570 = sbr.rel (%p568) target = $region68
      $region67: #{tpu_custom_call.1} parent=5 // pred_region
        %s571 = ssub.s32 %s20, 2
        // Predicated region
        $region69: #{tpu_custom_call.1} parent=67 // pred_check
          %p572 = pneg %p180
        $region70: #{tpu_custom_call.1} parent=67 // pred_check_branch
          %574 = sbr.rel (%p572) target = $region72
        $region71: #{tpu_custom_call.1} parent=67 // pred_region
          %s575 = sand.u32 %s165, 1
          %s576 = scalar_lea.sflag [#allocation4], %s575
          %s577 = sand.u32 %s165, 1
          %s578 = smul.addr %s577, 4
          %s579 = scalar_lea.vmem [#allocation10], %s578
          %580 = dma.done %s576, 64
        $region72: #{tpu_custom_call.1} parent=67 // pred_fallthru
          _
      $region68: #{tpu_custom_call.1} parent=5 // pred_fallthru
        _
    $region6: #{tpu_custom_call.1} parent=1 // loop_footer
      %s24 = sadd.s32 1, %s20
    $region7: #{tpu_custom_call.1} parent=1 // loop_footer_branch
      %19 = sbr.rel target = $region3
    $region8: #{tpu_custom_call.1} parent=1 // loop_exit
      _
    %581 = vsyncpa [#allocation3], 1
    %s582 = scalar_lea.sflag [#allocation3], 1
    %583 = vsyncpa %s582, 1
    %584 = vsyncpa [#allocation6], 1
    %s585 = scalar_lea.sflag [#allocation6], 1
    %586 = vsyncpa %s585, 1
    %587 = vsyncpa [#allocation9], 1
    %588 = vsyncpa [#allocation4], 1
    %s589 = scalar_lea.sflag [#allocation4], 1
    %590 = vsyncpa %s589, 1

// kernel: tpu_custom_call.1
$region0: #{tpu_custom_call.1}
  #allocation0 [shape = 'u32[]', space=smem, size = 0x4, offset = 0x4, fixed_abs, tag = 'smem constant byte address 0x4 - core index']
  #allocation1 [shape = 'u32[144,128]{1,0:T(1,128)}', space=vmem, size = 0x12000, scoped, tag = 'internal scratch']
  %s0 = inlined_call_operand.hbm [shape: f32[2,128], index: 0, kind: input, shape index: {}]
  %s1 = inlined_call_operand.hbm [shape: bf16[2,8,128], index: 1, kind: input, shape index: {}]
  %s2 = inlined_call_operand.hbm [shape: bf16[128,128], index: 2, kind: input, shape index: {}]
  %s3 = inlined_call_operand.vmem [shape: f32[1,128], index: 3, kind: input, shape index: {}]
  %s4 = inlined_call_operand.hbm [shape: bf16[128,128], index: 4, kind: input, shape index: {}]
  %s5 = inlined_call_operand.vmem [shape: f32[1,128], index: 5, kind: input, shape index: {}]
  %s6 = inlined_call_operand.hbm [shape: bf16[2,8,128], index: 6, kind: output, shape index: {}]
  %s7 = sld [smem:[#allocation0]]
  $region73: #{tpu_custom_call.1} parent=0
    _
  %s9 = ssub.s32 1, %s7
  %s10 = scalar_select 0, %s9, %s7
  $region1: #{tpu_custom_call.1} parent=0
    #allocation2 [shape = 'u8[1024]{0}', space=vmem, size = 0x400, scoped, tag = 'input window, operand 0, single buffered']
    #allocation3 [shape = 's32[2]{0}', space=sflag, size = 0x8, scoped, tag = 'scoped memory for tpu_custom_call.1']
    #allocation4 [shape = 's32[2]{0}', space=sflag, size = 0x8, scoped, tag = 'scoped memory for tpu_custom_call.1']
    #allocation5 [shape = 'u8[4096]{0}', space=vmem, size = 0x1000, scoped, tag = 'input window, operand 1']
    #allocation6 [shape = 's32[2]{0}', space=sflag, size = 0x8, scoped, tag = 'scoped memory for tpu_custom_call.1']
    #allocation7 [shape = 'u8[32768]{0}', space=vmem, size = 0x8000, scoped, tag = 'input window, operand 2, single buffered']
    #allocation8 [shape = 'u8[32768]{0}', space=vmem, size = 0x8000, scoped, tag = 'input window, operand 4, single buffered']
    #allocation9 [shape = 's32[1]{0}', space=sflag, size = 0x4, scoped, tag = 'scoped memory for tpu_custom_call.1']
    #allocation10 [shape = 'u8[4096]{0}', space=vmem, size = 0x1000, scoped, tag = 'output window, operand 0']
    %11 = vsyncpa [#allocation3], 0
    %12 = vsyncpa [#allocation6], 0
    %s13 = scalar_lea.sflag [#allocation6], 1
    %14 = vsyncpa %s13, 0
    %15 = vsyncpa [#allocation9], 0
    %16 = vsyncpa [#allocation4], 0
    %s17 = scalar_lea.sflag [#allocation4], 1
    %18 = vsyncpa %s17, 0
    loop: start=0, step=1, limit=4
    $region2: #{tpu_custom_call.1} parent=1 // loop_pre_header
      _
    $region3: #{tpu_custom_call.1} parent=1 // loop_header
      %s20 = sphi 0, %s24
      %p21 = scmp.ge.s32.totalorder %s20, 4
      %s28 = sphi 0, %s28
      %s30 = sphi 0, %s28
      %s31 = sphi 0, %s30
      %s45 = sphi 0, %s31
      %s51 = sphi 0, %s53
      %s54 = sphi 0, %s51
      %s55 = sphi 0, %s54
      %s71 = sphi 0, %s55
      %s75 = sphi 0, %s75
      %s77 = sphi 0, %s75
      %s78 = sphi 0, %s77
      %s92 = sphi 0, %s78
      %s96 = sphi 0, %s96
      %s98 = sphi 0, %s96
      %s99 = sphi 0, %s98
      %s113 = sphi 0, %s99
      %s117 = sphi 0, %s117
      %s119 = sphi 0, %s117
      %s120 = sphi 0, %s119
      %s134 = sphi 0, %s120
      %s138 = sphi 0, %s138
      %s140 = sphi 0, %s138
      %s141 = sphi 0, %s140
      %s155 = sphi 0, %s141
      %s161 = sphi 0, %s163
      %s164 = sphi 0, %s161
      %s165 = sphi 0, %s164
      %s181 = sphi 0, %s165
    $region4: #{tpu_custom_call.1} parent=1 // loop_header_branch
      %23 = sbr.rel (%p21) target = $region8
    $region5: #{tpu_custom_call.1} parent=1 // loop_body
      %s25 = ssub.s32 %s20, 1
      %s26 = ssub.s32 %s20, 2
      %s27 = sadd.s32 %s20, 1
      %s29 = sadd.s32 %s28, 1
      %p32 = scmp.eq.s32.totalorder %s20, 1
      %p33 = scmp.ne.s32.totalorder %s28, %s30
      %p34 = scmp.eq.s32.totalorder %s20, 0
      %p35 = por %p33, %p34
      %p36 = scmp.ne.s32.totalorder %s28, %s30
      %p37 = scmp.eq.s32.totalorder %s25, 1
      %p38 = por %p36, %p37
      %p39 = scmp.ne.s32.totalorder %s30, %s31
      %p40 = scmp.eq.s32.totalorder %s25, 0
      %p41 = por %p39, %p40
      %p42 = scmp.ne.s32.totalorder %s30, %s31
      %p43 = scmp.eq.s32.totalorder %s26, 1
      %p44 = por %p42, %p43
      %p46 = scmp.ne.s32.totalorder %s31, %s45
      %p47 = scmp.eq.s32.totalorder %s26, 0
      %p48 = por %p46, %p47
      %s49 = ssub.s32 %s20, %s27
      %p50 = scmp.eq.s32.totalorder %s49, 0
      %s52 = sadd.s32 %s51, 1
      %s53 = scalar_select %p50, %s51, %s52
      %p56 = pneg %p50
      %p57 = scmp.eq.s32.totalorder %s20, 1
      %p58 = por %p56, %p57
      %p59 = scmp.ne.s32.totalorder %s51, %s54
      %p60 = scmp.eq.s32.totalorder %s20, 0
      %p61 = por %p59, %p60
      %p62 = scmp.ne.s32.totalorder %s51, %s54
      %p63 = scmp.eq.s32.totalorder %s25, 1
      %p64 = por %p62, %p63
      %p65 = scmp.ne.s32.totalorder %s54, %s55
      %p66 = scmp.eq.s32.totalorder %s25, 0
      %p67 = por %p65, %p66
      %p68 = scmp.ne.s32.totalorder %s54, %s55
      %p69 = scmp.eq.s32.totalorder %s26, 1
      %p70 = por %p68, %p69
      %p72 = scmp.ne.s32.totalorder %s55, %s71
      %p73 = scmp.eq.s32.totalorder %s26, 0
      %p74 = por %p72, %p73
      %s76 = sadd.s32 %s75, 1
      %p79 = scmp.eq.s32.totalorder %s20, 1
      %p80 = scmp.ne.s32.totalorder %s75, %s77
      %p81 = scmp.eq.s32.totalorder %s20, 0
      %p82 = por %p80, %p81
      %p83 = scmp.ne.s32.totalorder %s75, %s77
      %p84 = scmp.eq.s32.totalorder %s25, 1
      %p85 = por %p83, %p84
      %p86 = scmp.ne.s32.totalorder %s77, %s78
      %p87 = scmp.eq.s32.totalorder %s25, 0
      %p88 = por %p86, %p87
      %p89 = scmp.ne.s32.totalorder %s77, %s78
      %p90 = scmp.eq.s32.totalorder %s26, 1
      %p91 = por %p89, %p90
      %p93 = scmp.ne.s32.totalorder %s78, %s92
      %p94 = scmp.eq.s32.totalorder %s26, 0
      %p95 = por %p93, %p94
      %s97 = sadd.s32 %s96, 1
      %p100 = scmp.eq.s32.totalorder %s20, 1
      %p101 = scmp.ne.s32.totalorder %s96, %s98
      %p102 = scmp.eq.s32.totalorder %s20, 0
      %p103 = por %p101, %p102
      %p104 = scmp.ne.s32.totalorder %s96, %s98
      %p105 = scmp.eq.s32.totalorder %s25, 1
      %p106 = por %p104, %p105
      %p107 = scmp.ne.s32.totalorder %s98, %s99
      %p108 = scmp.eq.s32.totalorder %s25, 0
      %p109 = por %p107, %p108
      %p110 = scmp.ne.s32.totalorder %s98, %s99
      %p111 = scmp.eq.s32.totalorder %s26, 1
      %p112 = por %p110, %p111
      %p114 = scmp.ne.s32.totalorder %s99, %s113
      %p115 = scmp.eq.s32.totalorder %s26, 0
      %p116 = por %p114, %p115
      %s118 = sadd.s32 %s117, 1
      %p121 = scmp.eq.s32.totalorder %s20, 1
      %p122 = scmp.ne.s32.totalorder %s117, %s119
      %p123 = scmp.eq.s32.totalorder %s20, 0
      %p124 = por %p122, %p123
      %p125 = scmp.ne.s32.totalorder %s117, %s119
      %p126 = scmp.eq.s32.totalorder %s25, 1
      %p127 = por %p125, %p126
      %p128 = scmp.ne.s32.totalorder %s119, %s120
      %p129 = scmp.eq.s32.totalorder %s25, 0
      %p130 = por %p128, %p129
      %p131 = scmp.ne.s32.totalorder %s119, %s120
      %p132 = scmp.eq.s32.totalorder %s26, 1
      %p133 = por %p131, %p132
      %p135 = scmp.ne.s32.totalorder %s120, %s134
      %p136 = scmp.eq.s32.totalorder %s26, 0
      %p137 = por %p135, %p136
      %s139 = sadd.s32 %s138, 1
      %p142 = scmp.eq.s32.totalorder %s20, 1
      %p143 = scmp.ne.s32.totalorder %s138, %s140
      %p144 = scmp.eq.s32.totalorder %s20, 0
      %p145 = por %p143, %p144
      %p146 = scmp.ne.s32.totalorder %s138, %s140
      %p147 = scmp.eq.s32.totalorder %s25, 1
      %p148 = por %p146, %p147
      %p149 = scmp.ne.s32.totalorder %s140, %s141
      %p150 = scmp.eq.s32.totalorder %s25, 0
      %p151 = por %p149, %p150
      %p152 = scmp.ne.s32.totalorder %s140, %s141
      %p153 = scmp.eq.s32.totalorder %s26, 1
      %p154 = por %p152, %p153
      %p156 = scmp.ne.s32.totalorder %s141, %s155
      %p157 = scmp.eq.s32.totalorder %s26, 0
      %p158 = por %p156, %p157
      %s159 = ssub.s32 %s20, %s27
      %p160 = scmp.eq.s32.totalorder %s159, 0
      %s162 = sadd.s32 %s161, 1
      %s163 = scalar_select %p160, %s161, %s162
      %p166 = pneg %p160
      %p167 = scmp.eq.s32.totalorder %s20, 1
      %p168 = por %p166, %p167
      %p169 = scmp.ne.s32.totalorder %s161, %s164
      %p170 = scmp.eq.s32.totalorder %s20, 0
      %p171 = por %p169, %p170
      %p172 = scmp.ne.s32.totalorder %s161, %s164
      %p173 = scmp.eq.s32.totalorder %s25, 1
      %p174 = por %p172, %p173
      %p175 = scmp.ne.s32.totalorder %s164, %s165
      %p176 = scmp.eq.s32.totalorder %s25, 0
      %p177 = por %p175, %p176
      %p178 = scmp.ne.s32.totalorder %s164, %s165
      %p179 = scmp.eq.s32.totalorder %s26, 1
      %p180 = por %p178, %p179
      %p182 = scmp.ne.s32.totalorder %s165, %s181
      %p183 = scmp.eq.s32.totalorder %s26, 0
      %p184 = por %p182, %p183
      %p185 = scmp.le.s32.totalorder 1, %s20
      %p186 = scmp.lt.s32.totalorder %s20, 3
      %p187 = pnand %p185, %p186
      %p188 = pneg %p187
      // Predicated region
      $region9: #{tpu_custom_call.1} parent=5 // pred_check
        _
      $region10: #{tpu_custom_call.1} parent=5 // pred_check_branch
        %190 = sbr.rel (%p187) target = $region12
      $region11: #{tpu_custom_call.1} parent=5 // pred_region
        %s191 = ssub.s32 %s20, 1
        // Predicated region
        $region13: #{tpu_custom_call.1} parent=11 // pred_check
          %p192 = pneg %p41
        $region14: #{tpu_custom_call.1} parent=11 // pred_check_branch
          %194 = sbr.rel (%p192) target = $region16
        $region15: #{tpu_custom_call.1} parent=11 // pred_region
          %s196 = ssub.s32 32, 32
          %197 = vsyncadd [#allocation3], %s196
          %s199 = sshll.u32 [#allocation2], 4
          %s200 = int_to_ptr.vmem [resolvable:$true] %s199
          %202 = dma.hbm_to_vmem [thread:$0]  %s0, 32, %s200, [#allocation3]
        $region16: #{tpu_custom_call.1} parent=11 // pred_fallthru
          _
        // Predicated region
        $region17: #{tpu_custom_call.1} parent=11 // pred_check
          %p203 = pneg %p88
        $region18: #{tpu_custom_call.1} parent=11 // pred_check_branch
          %205 = sbr.rel (%p203) target = $region20
        $region19: #{tpu_custom_call.1} parent=11 // pred_region
          %s207 = ssub.s32 1024, 1024
          %208 = vsyncadd [#allocation6], %s207
          %s209 = sshll.u32 [#allocation7], 4
          %s210 = int_to_ptr.vmem [resolvable:$true] %s209
          %215 = dma.hbm_to_vmem [thread:$0]  %s2, 1024, %s210, [#allocation6], 64, 64, 4
        $region20: #{tpu_custom_call.1} parent=11 // pred_fallthru
          _
        // Predicated region
        $region21: #{tpu_custom_call.1} parent=11 // pred_check
          %p216 = pneg %p109
        $region22: #{tpu_custom_call.1} parent=11 // pred_check_branch
          %218 = sbr.rel (%p216) target = $region24
        $region23: #{tpu_custom_call.1} parent=11 // pred_region
          _
        $region24: #{tpu_custom_call.1} parent=11 // pred_fallthru
          _
        // Predicated region
        $region25: #{tpu_custom_call.1} parent=11 // pred_check
          %p219 = pneg %p130
        $region26: #{tpu_custom_call.1} parent=11 // pred_check_branch
          %221 = sbr.rel (%p219) target = $region28
        $region27: #{tpu_custom_call.1} parent=11 // pred_region
          %s223 = ssub.s32 1024, 1024
          %224 = vsyncadd [#allocation9], %s223
          %s225 = sshll.u32 [#allocation8], 4
          %s226 = int_to_ptr.vmem [resolvable:$true] %s225
          %231 = dma.hbm_to_vmem [thread:$0]  %s4, 1024, %s226, [#allocation9], 64, 64, 4
        $region28: #{tpu_custom_call.1} parent=11 // pred_fallthru
          _
        // Predicated region
        $region29: #{tpu_custom_call.1} parent=11 // pred_check
          %p232 = pneg %p151
        $region30: #{tpu_custom_call.1} parent=11 // pred_check_branch
          %234 = sbr.rel (%p232) target = $region32
        $region31: #{tpu_custom_call.1} parent=11 // pred_region
          _
        $region32: #{tpu_custom_call.1} parent=11 // pred_fallthru
          _
      $region12: #{tpu_custom_call.1} parent=5 // pred_fallthru
        _
      %p235 = scmp.lt.s32.totalorder %s20, 2
      // Predicated region
      $region33: #{tpu_custom_call.1} parent=5 // pred_check
        %p236 = pneg %p235
      $region34: #{tpu_custom_call.1} parent=5 // pred_check_branch
        %238 = sbr.rel (%p236) target = $region36
      $region35: #{tpu_custom_call.1} parent=5 // pred_region
        // Predicated region
        $region37: #{tpu_custom_call.1} parent=35 // pred_check
          %p239 = pneg %p61
        $region38: #{tpu_custom_call.1} parent=35 // pred_check_branch
          %241 = sbr.rel (%p239) target = $region40
        $region39: #{tpu_custom_call.1} parent=35 // pred_region
          %s242 = sand.u32 %s20, 1
          %s243 = scalar_lea.sflag [#allocation6], %s242
          %s244 = sand.u32 %s51, 1
          %s245 = smul.addr %s244, 4
          %s246 = scalar_lea.vmem [#allocation5], %s245
          %s248 = ssub.s32 64, 64
          %249 = vsyncadd %s243, %s248
          %s250 = smul.addr %s20, 64
          %s251 = scalar_lea.hbm %s1, %s250
          %s253 = sshll.u32 %s246, 4
          %s254 = int_to_ptr.vmem [resolvable:$true] %s253
          %256 = dma.hbm_to_vmem [thread:$0]  %s251, 64, %s254, %s243
        $region40: #{tpu_custom_call.1} parent=35 // pred_fallthru
          _
      $region36: #{tpu_custom_call.1} parent=5 // pred_fallthru
        _
      %p257 = scmp.le.s32.totalorder 1, %s20
      %p258 = scmp.lt.s32.totalorder %s20, 3
      %p259 = pnand %p257, %p258
      %p260 = pneg %p259
      // Predicated region
      $region41: #{tpu_custom_call.1} parent=5 // pred_check
        _
      $region42: #{tpu_custom_call.1} parent=5 // pred_check_branch
        %262 = sbr.rel (%p259) target = $region44
      $region43: #{tpu_custom_call.1} parent=5 // pred_region
        %s263 = ssub.s32 %s20, 1
        // Predicated region
        $region45: #{tpu_custom_call.1} parent=43 // pred_check
          %p264 = pneg %p41
        $region46: #{tpu_custom_call.1} parent=43 // pred_check_branch
          %266 = sbr.rel (%p264) target = $region48
        $region47: #{tpu_custom_call.1} parent=43 // pred_region
          %267 = dma.done [#allocation3], 32
        $region48: #{tpu_custom_call.1} parent=43 // pred_fallthru
          _
        %s268 = sand.u32 %s25, 1
        %s269 = scalar_lea.sflag [#allocation6], %s268
        %s270 = sand.u32 %s54, 1
        %s271 = smul.addr %s270, 4
        %s272 = scalar_lea.vmem [#allocation5], %s271
        // Predicated region
        $region49: #{tpu_custom_call.1} parent=43 // pred_check
          %p273 = pneg %p67
        $region50: #{tpu_custom_call.1} parent=43 // pred_check_branch
          %275 = sbr.rel (%p273) target = $region52
        $region51: #{tpu_custom_call.1} parent=43 // pred_region
          %276 = dma.done %s269, 64
        $region52: #{tpu_custom_call.1} parent=43 // pred_fallthru
          _
        // Predicated region
        $region53: #{tpu_custom_call.1} parent=43 // pred_check
          %p277 = pneg %p88
        $region54: #{tpu_custom_call.1} parent=43 // pred_check_branch
          %279 = sbr.rel (%p277) target = $region56
        $region55: #{tpu_custom_call.1} parent=43 // pred_region
          %280 = dma.done [#allocation6], 1024
        $region56: #{tpu_custom_call.1} parent=43 // pred_fallthru
          _
        // Predicated region
        $region57: #{tpu_custom_call.1} parent=43 // pred_check
          %p281 = pneg %p130
        $region58: #{tpu_custom_call.1} parent=43 // pred_check_branch
          %283 = sbr.rel (%p281) target = $region60
        $region59: #{tpu_custom_call.1} parent=43 // pred_region
          %284 = dma.done [#allocation9], 1024
        $region60: #{tpu_custom_call.1} parent=43 // pred_fallthru
          _
        %p285 = pneg %p41
        %p286 = pneg %p38
        %s287 = sand.u32 %s25, 1
        %s288 = scalar_lea.sflag [#allocation6], %s287
        %s289 = sand.u32 %s54, 1
        %s290 = smul.addr %s289, 4
        %s291 = scalar_lea.vmem [#allocation5], %s290
        %p292 = pneg %p67
        %p293 = pneg %p64
        %p294 = pneg %p88
        %p295 = pneg %p85
        %p296 = pneg %p109
        %p297 = pneg %p106
        %p298 = pneg %p130
        %p299 = pneg %p127
        %p300 = pneg %p151
        %p301 = pneg %p148
        %p302 = pneg %p177
        %p303 = pneg %p174
        %s304 = sand.u32 %s164, 1
        %s305 = scalar_lea.sflag [#allocation4], %s304
        %s306 = sand.u32 %s164, 1
        %s307 = smul.addr %s306, 4
        %s308 = scalar_lea.vmem [#allocation10], %s307
        %v310 = vld [vmem:[%s272] sm:$0xf]
        %v311 = vld [vmem:[#allocation7] sm:$0xf]
        %v312 = vld [vmem:[#allocation7 + $0x4] sm:$0xf]
        %v313 = vld [vmem:[#allocation7 + $0x8] sm:$0xf]
        %v314 = vld [vmem:[#allocation7 + $0xc] sm:$0xf]
        %v315 = vld [vmem:[#allocation7 + $0x10] sm:$0xf]
        %v316 = vld [vmem:[#allocation7 + $0x14] sm:$0xf]
        %v317 = vld [vmem:[#allocation7 + $0x18] sm:$0xf]
        %v318 = vld [vmem:[#allocation7 + $0x1c] sm:$0xf]
        %v319 = vld [vmem:[#allocation7 + $0x20] sm:$0xf]
        %v320 = vld [vmem:[#allocation7 + $0x24] sm:$0xf]
        %v321 = vld [vmem:[#allocation7 + $0x28] sm:$0xf]
        %v322 = vld [vmem:[#allocation7 + $0x2c] sm:$0xf]
        %v323 = vld [vmem:[#allocation7 + $0x30] sm:$0xf]
        %v324 = vld [vmem:[#allocation7 + $0x34] sm:$0xf]
        %v325 = vld [vmem:[#allocation7 + $0x38] sm:$0xf]
        %v326 = vld [vmem:[#allocation7 + $0x3c] sm:$0xf]
        %v327 = vld [vmem:[%s3] sm:$0x1]
        %v329 = vlaneseq
        %v330 = vshrl.u32 %v329, 7
        %v331 = vsub.s32 0, %v330
        %v332 = vrot.slane %v327, %v331
        %v350 = vunpack.c.l.b16 %v311
        %v351 = vunpack.c.l.b16 %v312
        %v352 = vunpack.c.l.b16 %v313
        %v353 = vunpack.c.l.b16 %v314
        %v354 = vunpack.c.l.b16 %v315
        %v355 = vunpack.c.l.b16 %v316
        %v356 = vunpack.c.l.b16 %v317
        %v357 = vunpack.c.l.b16 %v318
        %v358 = vunpack.c.l.b16 %v319
        %v359 = vunpack.c.l.b16 %v320
        %v360 = vunpack.c.l.b16 %v321
        %v361 = vunpack.c.l.b16 %v322
        %v362 = vunpack.c.l.b16 %v323
        %v363 = vunpack.c.l.b16 %v324
        %v364 = vunpack.c.l.b16 %v325
        %v365 = vunpack.c.l.b16 %v326
        %v366 = vpack.c.b16 %v351, %v350
        %v367 = vpack.c.b16 %v353, %v352
        %v368 = vpack.c.b16 %v355, %v354
        %v369 = vpack.c.b16 %v357, %v356
        %v370 = vpack.c.b16 %v359, %v358
        %v371 = vpack.c.b16 %v361, %v360
        %v372 = vpack.c.b16 %v363, %v362
        %v373 = vpack.c.b16 %v365, %v364
        %382 = vmatprep.subr.bf16.mxu0 0
        %383 = vmatpush1.bf16.msra.mxu0 %v373
        %384 = vmatprep.subr.bf16.mxu0 0
        %385 = vmatpush1.bf16.msra.mxu0 %v372
        %386 = vmatprep.subr.bf16.mxu0 0
        %387 = vmatpush1.bf16.msra.mxu0 %v371
        %388 = vmatprep.subr.bf16.mxu0 0
        %389 = vmatpush1.bf16.msra.mxu0 %v370
        %390 = vmatprep.subr.bf16.mxu0 0
        %391 = vmatpush1.bf16.msra.mxu0 %v369
        %392 = vmatprep.subr.bf16.mxu0 0
        %393 = vmatpush1.bf16.msra.mxu0 %v368
        %394 = vmatprep.subr.bf16.mxu0 0
        %395 = vmatpush1.bf16.msra.mxu0 %v367
        %396 = vmatprep.subr.bf16.mxu0 0
        %397 = vmatpush1.bf16.msra.mxu0 %v366
        %398 = vmatprep.subr.bf16.mxu0 0
        %399 = vmatpush2.bf16.msra.mxu0 0
        %400 = vmatprep.subr.bf16.mxu0 0
        %401 = vmatpush2.bf16.msra.mxu0 0
        %402 = vmatprep.subr.bf16.mxu0 0
        %403 = vmatpush2.bf16.msra.mxu0 0
        %404 = vmatprep.subr.bf16.mxu0 0
        %405 = vmatpush2.bf16.msra.mxu0 0
        %406 = vmatprep.subr.bf16.mxu0 0
        %407 = vmatpush2.bf16.msra.mxu0 0
        %408 = vmatprep.subr.bf16.mxu0 0
        %409 = vmatpush2.bf16.msra.mxu0 0
        %410 = vmatprep.subr.bf16.mxu0 0
        %411 = vmatpush2.bf16.msra.mxu0 0
        %412 = vmatprep.subr.bf16.mxu0 0
        %413 = vmatpush2.bf16.msra.mxu0 0
        %414 = vmatprep.mubr.bf16.mxu0 0
        %415 = vmatmul.mubr.bf16.gmra.mxu0 %v310
        %v416 = vpop.f32.mrf.mxu0
        %v417 = vadd.f32 %v332, %v416
        %v418 = vpop.f32.mrf.mxu0
        %v419 = vpop.f32.mrf.mxu0
        %v420 = vpop.f32.mrf.mxu0
        %421 = vdwg.mxu0
        %s422 = scalar_lea.vmem [#allocation2], %s25
        %v423 = vld [vmem:[%s422] sm:$0x1]
        %v424 = vrot.slane %v417, 7
        %v425 = vlaneseq
        %v426 = vshrl.u32 %v425, 7
        %vm427 = vcmp.eq.s32.totalorder %v426, 0
        %v428 = vlaneseq
        %v429 = vshrl.u32 %v428, 7
        %v430 = vsub.s32 0, %v429
        %v431 = vrot.slane %v423, %v430
        %v432 = vsel %vm427, %v431, %v424
        %v433 = vpack.c.bf16 %v432, %v432
        %v434 = vld [vmem:[#allocation8] sm:$0xf]
        %v435 = vld [vmem:[#allocation8 + $0x4] sm:$0xf]
        %v436 = vld [vmem:[#allocation8 + $0x8] sm:$0xf]
        %v437 = vld [vmem:[#allocation8 + $0xc] sm:$0xf]
        %v438 = vld [vmem:[#allocation8 + $0x10] sm:$0xf]
        %v439 = vld [vmem:[#allocation8 + $0x14] sm:$0xf]
        %v440 = vld [vmem:[#allocation8 + $0x18] sm:$0xf]
        %v441 = vld [vmem:[#allocation8 + $0x1c] sm:$0xf]
        %v442 = vld [vmem:[#allocation8 + $0x20] sm:$0xf]
        %v443 = vld [vmem:[#allocation8 + $0x24] sm:$0xf]
        %v444 = vld [vmem:[#allocation8 + $0x28] sm:$0xf]
        %v445 = vld [vmem:[#allocation8 + $0x2c] sm:$0xf]
        %v446 = vld [vmem:[#allocation8 + $0x30] sm:$0xf]
        %v447 = vld [vmem:[#allocation8 + $0x34] sm:$0xf]
        %v448 = vld [vmem:[#allocation8 + $0x38] sm:$0xf]
        %v449 = vld [vmem:[#allocation8 + $0x3c] sm:$0xf]
        %v450 = vunpack.c.l.bf16 %v310
        %v467 = vunpack.c.l.b16 %v434
        %v468 = vunpack.c.l.b16 %v435
        %v469 = vunpack.c.l.b16 %v436
        %v470 = vunpack.c.l.b16 %v437
        %v471 = vunpack.c.l.b16 %v438
        %v472 = vunpack.c.l.b16 %v439
        %v473 = vunpack.c.l.b16 %v440
        %v474 = vunpack.c.l.b16 %v441
        %v475 = vunpack.c.l.b16 %v442
        %v476 = vunpack.c.l.b16 %v443
        %v477 = vunpack.c.l.b16 %v444
        %v478 = vunpack.c.l.b16 %v445
        %v479 = vunpack.c.l.b16 %v446
        %v480 = vunpack.c.l.b16 %v447
        %v481 = vunpack.c.l.b16 %v448
        %v482 = vunpack.c.l.b16 %v449
        %v483 = vpack.c.b16 %v468, %v467
        %v484 = vpack.c.b16 %v470, %v469
        %v485 = vpack.c.b16 %v472, %v471
        %v486 = vpack.c.b16 %v474, %v473
        %v487 = vpack.c.b16 %v476, %v475
        %v488 = vpack.c.b16 %v478, %v477
        %v489 = vpack.c.b16 %v480, %v479
        %v490 = vpack.c.b16 %v482, %v481
        %499 = vmatprep.subr.bf16.mxu0 0
        %500 = vmatpush1.bf16.msra.mxu0 %v490
        %501 = vmatprep.subr.bf16.mxu0 0
        %502 = vmatpush1.bf16.msra.mxu0 %v489
        %503 = vmatprep.subr.bf16.mxu0 0
        %504 = vmatpush1.bf16.msra.mxu0 %v488
        %505 = vmatprep.subr.bf16.mxu0 0
        %506 = vmatpush1.bf16.msra.mxu0 %v487
        %507 = vmatprep.subr.bf16.mxu0 0
        %508 = vmatpush1.bf16.msra.mxu0 %v486
        %509 = vmatprep.subr.bf16.mxu0 0
        %510 = vmatpush1.bf16.msra.mxu0 %v485
        %511 = vmatprep.subr.bf16.mxu0 0
        %512 = vmatpush1.bf16.msra.mxu0 %v484
        %513 = vmatprep.subr.bf16.mxu0 0
        %514 = vmatpush1.bf16.msra.mxu0 %v483
        %515 = vmatprep.subr.bf16.mxu0 0
        %516 = vmatpush2.bf16.msra.mxu0 0
        %517 = vmatprep.subr.bf16.mxu0 0
        %518 = vmatpush2.bf16.msra.mxu0 0
        %519 = vmatprep.subr.bf16.mxu0 0
        %520 = vmatpush2.bf16.msra.mxu0 0
        %521 = vmatprep.subr.bf16.mxu0 0
        %522 = vmatpush2.bf16.msra.mxu0 0
        %523 = vmatprep.subr.bf16.mxu0 0
        %524 = vmatpush2.bf16.msra.mxu0 0
        %525 = vmatprep.subr.bf16.mxu0 0
        %526 = vmatpush2.bf16.msra.mxu0 0
        %527 = vmatprep.subr.bf16.mxu0 0
        %528 = vmatpush2.bf16.msra.mxu0 0
        %529 = vmatprep.subr.bf16.mxu0 0
        %530 = vmatpush2.bf16.msra.mxu0 0
        %531 = vmatprep.mubr.bf16.mxu0 0
        %532 = vmatmul.mubr.bf16.gmra.mxu0 %v433
        %v533 = vpop.f32.mrf.mxu0
        %v534 = vadd.f32 %v450, %v533
        %v535 = vpop.f32.mrf.mxu0
        %v536 = vpop.f32.mrf.mxu0
        %v537 = vpop.f32.mrf.mxu0
        %538 = vdwg.mxu0
        %v539 = vld [vmem:[%s5] sm:$0x1]
        %v541 = vlaneseq
        %v542 = vshrl.u32 %v541, 7
        %v543 = vsub.s32 0, %v542
        %v544 = vrot.slane %v539, %v543
        %v546 = vadd.f32 %v534, %v544
        %v547 = vpack.c.bf16 %v546, %v546
        %548 = vst [vmem:[%s308] sm:$0xf] %v547
        %s549 = sand.u32 %s164, 1
        %s550 = scalar_lea.sflag [#allocation4], %s549
        %s551 = sand.u32 %s164, 1
        %s552 = smul.addr %s551, 4
        %s553 = scalar_lea.vmem [#allocation10], %s552
        // Predicated region
        $region61: #{tpu_custom_call.1} parent=43 // pred_check
          %p554 = pneg %p174
        $region62: #{tpu_custom_call.1} parent=43 // pred_check_branch
          %556 = sbr.rel (%p554) target = $region64
        $region63: #{tpu_custom_call.1} parent=43 // pred_region
          %s558 = ssub.s32 64, 64
          %559 = vsyncadd %s550, %s558
          %s560 = smul.addr %s25, 64
          %s561 = scalar_lea.hbm %s6, %s560
          %s563 = sshll.u32 %s553, 4
          %s564 = int_to_ptr.vmem [resolvable:$true] %s563
          %566 = dma.vmem_to_hbm [thread:$0]  %s564, 64, %s561, %s550
        $region64: #{tpu_custom_call.1} parent=43 // pred_fallthru
          _
      $region44: #{tpu_custom_call.1} parent=5 // pred_fallthru
        _
      %p567 = scmp.le.s32.totalorder 2, %s20
      // Predicated region
      $region65: #{tpu_custom_call.1} parent=5 // pred_check
        %p568 = pneg %p567
      $region66: #{tpu_custom_call.1} parent=5 // pred_check_branch
        %570 = sbr.rel (%p568) target = $region68
      $region67: #{tpu_custom_call.1} parent=5 // pred_region
        %s571 = ssub.s32 %s20, 2
        // Predicated region
        $region69: #{tpu_custom_call.1} parent=67 // pred_check
          %p572 = pneg %p180
        $region70: #{tpu_custom_call.1} parent=67 // pred_check_branch
          %574 = sbr.rel (%p572) target = $region72
        $region71: #{tpu_custom_call.1} parent=67 // pred_region
          %s575 = sand.u32 %s165, 1
          %s576 = scalar_lea.sflag [#allocation4], %s575
          %s577 = sand.u32 %s165, 1
          %s578 = smul.addr %s577, 4
          %s579 = scalar_lea.vmem [#allocation10], %s578
          %580 = dma.done %s576, 64
        $region72: #{tpu_custom_call.1} parent=67 // pred_fallthru
          _
      $region68: #{tpu_custom_call.1} parent=5 // pred_fallthru
        _
    $region6: #{tpu_custom_call.1} parent=1 // loop_footer
      %s24 = sadd.s32 1, %s20
    $region7: #{tpu_custom_call.1} parent=1 // loop_footer_branch
      %19 = sbr.rel target = $region3
    $region8: #{tpu_custom_call.1} parent=1 // loop_exit
      _
    %581 = vsyncpa [#allocation3], 1
    %s582 = scalar_lea.sflag [#allocation3], 1
    %583 = vsyncpa %s582, 1
    %584 = vsyncpa [#allocation6], 1
    %s585 = scalar_lea.sflag [#allocation6], 1
    %586 = vsyncpa %s585, 1
    %587 = vsyncpa [#allocation9], 1
    %588 = vsyncpa [#allocation4], 1
    %s589 = scalar_lea.sflag [#allocation4], 1
    %590 = vsyncpa %s589, 1

</llo_original>
